<compile_context>
chip_gen: v5e
topology: v5e:2x2
jax: 0.10.0
libtpu: 0.0.40
codegen_flags: <defaults>
</compile_context>

<pallas_src>
import jax
import jax.numpy as jnp
from jax.experimental import pallas as pl
from jax.experimental.pallas import tpu as pltpu

KSIZE = 7
PAD = (KSIZE - 1) // 2  # 3


# ---------------------------------------------------------------------------
# Host-side: fold the conv weights into banded (column/kx) matrices.
#   R_ky[wi, wo] = w[ky, wi - wo + 3]   iff 0 <= wi - wo + 3 < 7   (W x W)
# stacked for the max- and mean-channel weights into a single (2W, W) operand
# per ky, so the kernel does ONE dot per ky:
#   t_ky = [cmax | cmean] @ [Rmax_ky ; Rmean_ky]            # (H, W)
#   conv[ho, wo] = sum_ky t_ky[ho + ky - 3, wo] + bias      # row shift = slice
# which reproduces the zero-padded 7x7 cross-correlation exactly.
# ---------------------------------------------------------------------------
def build_conv_matrices(w, bias, W):
    """w: (1, 2, 7, 7) conv weight (in-ch 0 = max map, 1 = mean map); bias: (1,)."""
    w = w.astype(jnp.float32)
    w_max, w_mean = w[0, 0], w[0, 1]                       # (7, 7) each

    wi = jnp.arange(W)[:, None]
    wo = jnp.arange(W)[None, :]
    kx = wi - wo + PAD                                      # (W, W)
    valid = (kx >= 0) & (kx < KSIZE)
    kx_c = jnp.clip(kx, 0, KSIZE - 1)

    def band(w_rows):                                       # (7,7) -> (7, W, W)
        return jnp.stack(
            [jnp.where(valid, w_rows[ky][kx_c], 0.0) for ky in range(KSIZE)],
            axis=0,
        )

    # Merge the max/mean bands along the contraction axis: (7, 2W, W).
    R = jnp.concatenate([band(w_max), band(w_mean)], axis=1)
    b = bias.astype(jnp.float32).reshape((1,))
    # bf16 MXU operand (single-pass matmul; accumulation stays f32 in-kernel).
    return R.astype(jnp.bfloat16), b


# ---------------------------------------------------------------------------
# Fused Pallas kernel (one batch element per grid step).
# ---------------------------------------------------------------------------
def spatial_gate_kernel(x_ref, r_ref, b_ref, o_ref):
    # x_ref / o_ref : (C, H, W) for the current batch element (B squeezed out)
    # r_ref         : (7, 2W, W) bf16, constant index_map -> resident in VMEM
    # b_ref         : (1,)       SMEM scalar
    C, H, W = x_ref.shape

    # Channel-wise max / mean as whole-block reductions (no per-channel loop).
    xf = x_ref[...].astype(jnp.float32)                     # (C, H, W)
    cmax = jnp.max(xf, axis=0)                              # (H, W)
    cmean = jnp.mean(xf, axis=0)                            # (H, W)
    # xf is not used below; the epilogue re-reads x_ref so the full f32 stack
    # does not stay live across the matmul section.

    # Single MXU operand per ky: [cmax | cmean]  (H, 2W), bf16.
    lhs = jnp.concatenate([cmax, cmean], axis=-1).astype(jnp.bfloat16)

    # 7x7 "same" conv: one banded matmul per ky (kx folded into R), then a
    # static row shift (slice + zero pad) for ky -- no shift matmuls.
    acc = jnp.zeros((H, W), jnp.float32)
    for ky in range(KSIZE):
        dy = ky - PAD
        t = jnp.dot(lhs, r_ref[ky], preferred_element_type=jnp.float32)  # (H, W)
        if dy == 0:
            acc = acc + t
        elif dy > 0:
            # acc[ho] += t[ho + dy]  for ho in [0, H - dy)
            acc = acc + jnp.concatenate(
                [t[dy:], jnp.zeros((dy, W), jnp.float32)], axis=0)
        else:
            # acc[ho] += t[ho + dy]  for ho in [-dy, H)
            acc = acc + jnp.concatenate(
                [jnp.zeros((-dy, W), jnp.float32), t[:H + dy]], axis=0)

    # Sigmoid gate (exp + reciprocal on the EUP), bias added once.
    scale = jax.nn.sigmoid(acc + b_ref[0])                  # (H, W)

    # Fused broadcasted store: re-read x (cheap VMEM vld) and scale all C.
    o_ref[...] = (x_ref[...].astype(jnp.float32) * scale[None]).astype(o_ref.dtype)


@jax.jit
def spatial_gate_pallas(x, w, bias):
    """x: (B, C, H, W); w: (1, 2, 7, 7); bias: (1,)."""
    B, C, H, W = x.shape
    R, b = build_conv_matrices(w, bias, W)

    return pl.pallas_call(
        spatial_gate_kernel,
        grid=(B,),
        in_specs=[
            pl.BlockSpec((None, C, H, W), lambda i: (i, 0, 0, 0)),    # x (per batch)
            pl.BlockSpec((KSIZE, 2 * W, W), lambda i: (0, 0, 0)),     # R (resident)
            pl.BlockSpec(memory_space=pltpu.MemorySpace.SMEM),        # bias scalar
        ],
        out_specs=pl.BlockSpec((None, C, H, W), lambda i: (i, 0, 0, 0)),
        out_shape=jax.ShapeDtypeStruct((B, C, H, W), x.dtype),
        compiler_params=pltpu.CompilerParams(
            dimension_semantics=("parallel",),
        ),
    )(x, R, b)


# ---------------------------------------------------------------------------
# Pure-JAX reference (direct elementwise port of the PyTorch forward).
# ---------------------------------------------------------------------------
def spatial_gate_reference(x, w, bias):
    x = x.astype(jnp.float32)
    B, C, H, W = x.shape
    cmax = jnp.max(x, axis=1)
    cmean = jnp.mean(x, axis=1)
    comp = jnp.stack([cmax, cmean], axis=1)                 # (B, 2, H, W)
    comp_p = jnp.pad(comp, ((0, 0), (0, 0), (PAD, PAD), (PAD, PAD)))
    y = jnp.zeros((B, H, W), jnp.float32) + bias[0]
    for ky in range(KSIZE):
        for kx in range(KSIZE):
            y = y + w[0, 0, ky, kx] * comp_p[:, 0, ky:ky + H, kx:kx + W]
            y = y + w[0, 1, ky, kx] * comp_p[:, 1, ky:ky + H, kx:kx + W]
    scale = jax.nn.sigmoid(y)[:, None, :, :]
    return x * scale


if __name__ == "__main__":
    B, C, H, W = 2, 4, 16, 16
    key = jax.random.PRNGKey(0)
    kx_, kw_, kb_ = jax.random.split(key, 3)

    x = jax.random.normal(kx_, (B, C, H, W), dtype=jnp.float32)
    # Conv2d(2, 1, 7) default-style init: U(-1/sqrt(fan_in), 1/sqrt(fan_in))
    bound = 1.0 / (2 * KSIZE * KSIZE) ** 0.5
    w = jax.random.uniform(kw_, (1, 2, KSIZE, KSIZE), jnp.float32, -bound, bound)
    bias = jax.random.uniform(kb_, (1,), jnp.float32, -bound, bound)

    out = spatial_gate_pallas(x, w, bias)
    out = jax.block_until_ready(out)

    ref = spatial_gate_reference(x, w, bias)
    assert out.shape == x.shape and out.dtype == x.dtype
    # Tolerance accounts for the single-pass bf16 MXU conv (relative error
    # ~2^-9 per operand, bounded further by the sigmoid); structural errors
    # (wrong shift / weight mapping) would be O(0.1-1), so this still
    # validates correctness.
    err = float(jnp.max(jnp.abs(out - ref)))
    assert jnp.allclose(out, ref, atol=2e-2, rtol=2e-2), err

    print("KERNEL_OK")
</pallas_src>

<mosaic_0001>
module attributes {stable_mosaic.version = 11 : i64} {
  func.func @spatial_gate_kernel(%arg0: i32, %arg1: memref<1x4x16x16xf32, #tpu.memory_space<vmem>>, %arg2: memref<7x32x16xbf16, #tpu.memory_space<vmem>>, %arg3: memref<1xf32, #tpu.memory_space<smem>>, %arg4: memref<1x4x16x16xf32, #tpu.memory_space<vmem>>) attributes {dimension_semantics = [#tpu.dimension_semantics<parallel>], iteration_bounds = array<i64: 2>, scalar_prefetch = 0 : i64, scratch_operands = 0 : i64, tpu.core_type = #tpu.core_type<tc>, window_params = [{transform_indices = @transform_0, window_bounds = array<i64: 1, 4, 16, 16>}, {pipeline_mode = #tpu.pipeline_mode<synchronous>, transform_indices = @transform_1, window_bounds = array<i64: 7, 32, 16>}, {transform_indices = @transform_2, window_bounds = array<i64: 1>}, {transform_indices = @transform_3, window_bounds = array<i64: 1, 4, 16, 16>}]} {
    %c0 = arith.constant 0 : index
    %c0_0 = arith.constant 0 : index
    %c0_1 = arith.constant 0 : index
    %c0_2 = arith.constant 0 : index
    %0 = vector.load %arg1[%c0, %c0_0, %c0_1, %c0_2] : memref<1x4x16x16xf32, #tpu.memory_space<vmem>>, vector<1x4x16x16xf32>
    %1 = vector.shape_cast %0 : vector<1x4x16x16xf32> to vector<4x16x16xf32>
    %cst = arith.constant dense<0xFF800000> : vector<16x16xf32>
    %2 = vector.multi_reduction <maximumf>, %1, %cst [0] : vector<4x16x16xf32> to vector<16x16xf32>
    %cst_3 = arith.constant dense<0.000000e+00> : vector<16x16xf32>
    %3 = vector.multi_reduction <add>, %1, %cst_3 [0] : vector<4x16x16xf32> to vector<16x16xf32>
    %cst_4 = arith.constant 4.000000e+00 : f32
    %4 = vector.broadcast %cst_4 : f32 to vector<16x16xf32>
    %5 = arith.divf %3, %4 : vector<16x16xf32>
    %6 = tpu.concatenate %2, %5 in 1 : vector<16x16xf32>, vector<16x16xf32> -> vector<16x32xf32>
    %7 = arith.truncf %6 : vector<16x32xf32> to vector<16x32xbf16>
    %cst_5 = arith.constant 0.000000e+00 : f32
    %8 = vector.broadcast %cst_5 : f32 to vector<16x16xf32>
    %c0_6 = arith.constant 0 : index
    %c0_7 = arith.constant 0 : index
    %c0_8 = arith.constant 0 : index
    %9 = vector.load %arg2[%c0_6, %c0_7, %c0_8] : memref<7x32x16xbf16, #tpu.memory_space<vmem>>, vector<1x32x16xbf16>
    %10 = vector.shape_cast %9 : vector<1x32x16xbf16> to vector<32x16xbf16>
    %cst_9 = arith.constant dense<0.000000e+00> : vector<16x16xf32>
    %11 = tpu.matmul %7, %10, %cst_9 {dimension_numbers = #tpu.dot_dimension_numbers<[1], [0], [0], [1], [0, 0, 1, 1], [], []>} : vector<16x32xbf16>, vector<32x16xbf16>, vector<16x16xf32> -> vector<16x16xf32>
    %cst_10 = arith.constant 0.000000e+00 : f32
    %12 = vector.broadcast %cst_10 : f32 to vector<3x16xf32>
    %13 = vector.extract_strided_slice %11 {offsets = [0, 0], sizes = [13, 16], strides = [1, 1]} : vector<16x16xf32> to vector<13x16xf32>
    %14 = tpu.concatenate %12, %13 in 0 : vector<3x16xf32>, vector<13x16xf32> -> vector<16x16xf32>
    %15 = arith.addf %8, %14 : vector<16x16xf32>
    %c1 = arith.constant 1 : index
    %c0_11 = arith.constant 0 : index
    %c0_12 = arith.constant 0 : index
    %16 = vector.load %arg2[%c1, %c0_11, %c0_12] : memref<7x32x16xbf16, #tpu.memory_space<vmem>>, vector<1x32x16xbf16>
    %17 = vector.shape_cast %16 : vector<1x32x16xbf16> to vector<32x16xbf16>
    %cst_13 = arith.constant dense<0.000000e+00> : vector<16x16xf32>
    %18 = tpu.matmul %7, %17, %cst_13 {dimension_numbers = #tpu.dot_dimension_numbers<[1], [0], [0], [1], [0, 0, 1, 1], [], []>} : vector<16x32xbf16>, vector<32x16xbf16>, vector<16x16xf32> -> vector<16x16xf32>
    %cst_14 = arith.constant 0.000000e+00 : f32
    %19 = vector.broadcast %cst_14 : f32 to vector<2x16xf32>
    %20 = vector.extract_strided_slice %18 {offsets = [0, 0], sizes = [14, 16], strides = [1, 1]} : vector<16x16xf32> to vector<14x16xf32>
    %21 = tpu.concatenate %19, %20 in 0 : vector<2x16xf32>, vector<14x16xf32> -> vector<16x16xf32>
    %22 = arith.addf %15, %21 : vector<16x16xf32>
    %c2 = arith.constant 2 : index
    %c0_15 = arith.constant 0 : index
    %c0_16 = arith.constant 0 : index
    %23 = vector.load %arg2[%c2, %c0_15, %c0_16] : memref<7x32x16xbf16, #tpu.memory_space<vmem>>, vector<1x32x16xbf16>
    %24 = vector.shape_cast %23 : vector<1x32x16xbf16> to vector<32x16xbf16>
    %cst_17 = arith.constant dense<0.000000e+00> : vector<16x16xf32>
    %25 = tpu.matmul %7, %24, %cst_17 {dimension_numbers = #tpu.dot_dimension_numbers<[1], [0], [0], [1], [0, 0, 1, 1], [], []>} : vector<16x32xbf16>, vector<32x16xbf16>, vector<16x16xf32> -> vector<16x16xf32>
    %cst_18 = arith.constant 0.000000e+00 : f32
    %26 = vector.broadcast %cst_18 : f32 to vector<1x16xf32>
    %27 = vector.extract_strided_slice %25 {offsets = [0, 0], sizes = [15, 16], strides = [1, 1]} : vector<16x16xf32> to vector<15x16xf32>
    %28 = tpu.concatenate %26, %27 in 0 : vector<1x16xf32>, vector<15x16xf32> -> vector<16x16xf32>
    %29 = arith.addf %22, %28 : vector<16x16xf32>
    %c3 = arith.constant 3 : index
    %c0_19 = arith.constant 0 : index
    %c0_20 = arith.constant 0 : index
    %30 = vector.load %arg2[%c3, %c0_19, %c0_20] : memref<7x32x16xbf16, #tpu.memory_space<vmem>>, vector<1x32x16xbf16>
    %31 = vector.shape_cast %30 : vector<1x32x16xbf16> to vector<32x16xbf16>
    %cst_21 = arith.constant dense<0.000000e+00> : vector<16x16xf32>
    %32 = tpu.matmul %7, %31, %cst_21 {dimension_numbers = #tpu.dot_dimension_numbers<[1], [0], [0], [1], [0, 0, 1, 1], [], []>} : vector<16x32xbf16>, vector<32x16xbf16>, vector<16x16xf32> -> vector<16x16xf32>
    %33 = arith.addf %29, %32 : vector<16x16xf32>
    %c4 = arith.constant 4 : index
    %c0_22 = arith.constant 0 : index
    %c0_23 = arith.constant 0 : index
    %34 = vector.load %arg2[%c4, %c0_22, %c0_23] : memref<7x32x16xbf16, #tpu.memory_space<vmem>>, vector<1x32x16xbf16>
    %35 = vector.shape_cast %34 : vector<1x32x16xbf16> to vector<32x16xbf16>
    %cst_24 = arith.constant dense<0.000000e+00> : vector<16x16xf32>
    %36 = tpu.matmul %7, %35, %cst_24 {dimension_numbers = #tpu.dot_dimension_numbers<[1], [0], [0], [1], [0, 0, 1, 1], [], []>} : vector<16x32xbf16>, vector<32x16xbf16>, vector<16x16xf32> -> vector<16x16xf32>
    %37 = vector.extract_strided_slice %36 {offsets = [1, 0], sizes = [15, 16], strides = [1, 1]} : vector<16x16xf32> to vector<15x16xf32>
    %cst_25 = arith.constant 0.000000e+00 : f32
    %38 = vector.broadcast %cst_25 : f32 to vector<1x16xf32>
    %39 = tpu.concatenate %37, %38 in 0 : vector<15x16xf32>, vector<1x16xf32> -> vector<16x16xf32>
    %40 = arith.addf %33, %39 : vector<16x16xf32>
    %c5 = arith.constant 5 : index
    %c0_26 = arith.constant 0 : index
    %c0_27 = arith.constant 0 : index
    %41 = vector.load %arg2[%c5, %c0_26, %c0_27] : memref<7x32x16xbf16, #tpu.memory_space<vmem>>, vector<1x32x16xbf16>
    %42 = vector.shape_cast %41 : vector<1x32x16xbf16> to vector<32x16xbf16>
    %cst_28 = arith.constant dense<0.000000e+00> : vector<16x16xf32>
    %43 = tpu.matmul %7, %42, %cst_28 {dimension_numbers = #tpu.dot_dimension_numbers<[1], [0], [0], [1], [0, 0, 1, 1], [], []>} : vector<16x32xbf16>, vector<32x16xbf16>, vector<16x16xf32> -> vector<16x16xf32>
    %44 = vector.extract_strided_slice %43 {offsets = [2, 0], sizes = [14, 16], strides = [1, 1]} : vector<16x16xf32> to vector<14x16xf32>
    %cst_29 = arith.constant 0.000000e+00 : f32
    %45 = vector.broadcast %cst_29 : f32 to vector<2x16xf32>
    %46 = tpu.concatenate %44, %45 in 0 : vector<14x16xf32>, vector<2x16xf32> -> vector<16x16xf32>
    %47 = arith.addf %40, %46 : vector<16x16xf32>
    %c6 = arith.constant 6 : index
    %c0_30 = arith.constant 0 : index
    %c0_31 = arith.constant 0 : index
    %48 = vector.load %arg2[%c6, %c0_30, %c0_31] : memref<7x32x16xbf16, #tpu.memory_space<vmem>>, vector<1x32x16xbf16>
    %49 = vector.shape_cast %48 : vector<1x32x16xbf16> to vector<32x16xbf16>
    %cst_32 = arith.constant dense<0.000000e+00> : vector<16x16xf32>
    %50 = tpu.matmul %7, %49, %cst_32 {dimension_numbers = #tpu.dot_dimension_numbers<[1], [0], [0], [1], [0, 0, 1, 1], [], []>} : vector<16x32xbf16>, vector<32x16xbf16>, vector<16x16xf32> -> vector<16x16xf32>
    %51 = vector.extract_strided_slice %50 {offsets = [3, 0], sizes = [13, 16], strides = [1, 1]} : vector<16x16xf32> to vector<13x16xf32>
    %cst_33 = arith.constant 0.000000e+00 : f32
    %52 = vector.broadcast %cst_33 : f32 to vector<3x16xf32>
    %53 = tpu.concatenate %51, %52 in 0 : vector<13x16xf32>, vector<3x16xf32> -> vector<16x16xf32>
    %54 = arith.addf %47, %53 : vector<16x16xf32>
    %c0_34 = arith.constant 0 : index
    %55 = memref.load %arg3[%c0_34] : memref<1xf32, #tpu.memory_space<smem>>
    %56 = vector.broadcast %55 : f32 to vector<16x16xf32>
    %57 = arith.addf %54, %56 : vector<16x16xf32>
    %58 = arith.negf %57 : vector<16x16xf32>
    %59 = math.exp %58 : vector<16x16xf32>
    %cst_35 = arith.constant 1.000000e+00 : f32
    %60 = vector.broadcast %cst_35 : f32 to vector<16x16xf32>
    %61 = arith.addf %60, %59 : vector<16x16xf32>
    %62 = arith.divf %60, %61 : vector<16x16xf32>
    %c0_36 = arith.constant 0 : index
    %c0_37 = arith.constant 0 : index
    %c0_38 = arith.constant 0 : index
    %c0_39 = arith.constant 0 : index
    %63 = vector.load %arg1[%c0_36, %c0_37, %c0_38, %c0_39] : memref<1x4x16x16xf32, #tpu.memory_space<vmem>>, vector<1x4x16x16xf32>
    %64 = vector.shape_cast %63 : vector<1x4x16x16xf32> to vector<4x16x16xf32>
    %65 = vector.shape_cast %62 : vector<16x16xf32> to vector<1x16x16xf32>
    %66 = vector.broadcast %65 : vector<1x16x16xf32> to vector<4x16x16xf32>
    %67 = arith.mulf %64, %66 : vector<4x16x16xf32>
    %c0_40 = arith.constant 0 : index
    %c0_41 = arith.constant 0 : index
    %c0_42 = arith.constant 0 : index
    %c0_43 = arith.constant 0 : index
    %68 = vector.load %arg4[%c0_40, %c0_41, %c0_42, %c0_43] : memref<1x4x16x16xf32, #tpu.memory_space<vmem>>, vector<1x4x16x16xf32>
    %69 = vector.shape_cast %68 : vector<1x4x16x16xf32> to vector<4x16x16xf32>
    %70 = vector.shape_cast %67 : vector<4x16x16xf32> to vector<1x4x16x16xf32>
    tpu.vector_store %arg4[%c0_40, %c0_41, %c0_42, %c0_43], %70 {strides = array<i32>} : memref<1x4x16x16xf32, #tpu.memory_space<vmem>>, vector<1x4x16x16xf32>,
    return
  }
  func.func @transform_0(%arg0: i32) -> (i32, i32, i32, i32) {
    %c0_i32 = arith.constant 0 : i32
    %c0_i32_0 = arith.constant 0 : i32
    %c0_i32_1 = arith.constant 0 : i32
    %c0_i32_2 = arith.constant 0 : i32
    return %arg0, %c0_i32, %c0_i32_0, %c0_i32_1 : i32, i32, i32, i32
  }
  func.func @transform_1(%arg0: i32) -> (i32, i32, i32) {
    %c0_i32 = arith.constant 0 : i32
    %c0_i32_0 = arith.constant 0 : i32
    %c0_i32_1 = arith.constant 0 : i32
    %c0_i32_2 = arith.constant 0 : i32
    return %c0_i32, %c0_i32_0, %c0_i32_1 : i32, i32, i32
  }
  func.func @transform_2(%arg0: i32) -> i32 {
    %c0_i32 = arith.constant 0 : i32
    %c0_i32_0 = arith.constant 0 : i32
    return %c0_i32 : i32
  }
  func.func @transform_3(%arg0: i32) -> (i32, i32, i32, i32) {
    %c0_i32 = arith.constant 0 : i32
    %c0_i32_0 = arith.constant 0 : i32
    %c0_i32_1 = arith.constant 0 : i32
    %c0_i32_2 = arith.constant 0 : i32
    return %arg0, %c0_i32, %c0_i32_0, %c0_i32_1 : i32, i32, i32, i32
  }
}

</mosaic_0001>

<llo_original>
// kernel: spatial_gate_pallas.1
$region0: #{spatial_gate_pallas.1}
  #allocation0 [shape = 'u32[]', space=smem, size = 0x4, offset = 0x4, fixed_abs, tag = 'smem constant byte address 0x4 - core index']
  #allocation1 [shape = 'u32[72,128]{1,0:T(1,128)}', space=vmem, size = 0x9000, scoped, tag = 'internal scratch']
  #allocation2 [shape = 'f32[1]{0:T(128)S(6)}', space=smem, size = 0x200, scoped, tag = 'scoped memory for spatial_gate_pallas.1']
  %s0 = inlined_call_operand.vmem [shape: f32[2,4,16,16], index: 0, kind: input, shape index: {}]
  %s1 = inlined_call_operand.vmem [shape: bf16[7,32,16], index: 1, kind: input, shape index: {}]
  %s2 = inlined_call_operand.<no memory space> [shape: f32[1], index: 2, kind: input, shape index: {}]
  %s3 = inlined_call_operand.hbm [shape: f32[2,4,16,16], index: 3, kind: output, shape index: {}]
  %s4 = sld [smem:[#allocation0]]
  $region45: #{spatial_gate_pallas.1} parent=0
    _
  %s6 = ssub.s32 1, %s4
  %s7 = scalar_select 0, %s6, %s4
  %8 = sst [smem:[#allocation2]] %s2
  $region1: #{spatial_gate_pallas.1} parent=0
    #allocation3 [shape = 'u8[65536]{0}', space=vmem, size = 0x10000, scoped, tag = 'output window, operand 0']
    #allocation4 [shape = 's32[2]{0}', space=sflag, size = 0x8, scoped, tag = 'scoped memory for spatial_gate_pallas.1']
    %9 = vsyncpa [#allocation4], 0
    %s10 = scalar_lea.sflag [#allocation4], 1
    %11 = vsyncpa %s10, 0
    loop: start=0, step=1, limit=4
    $region2: #{spatial_gate_pallas.1} parent=1 // loop_pre_header
      _
    $region3: #{spatial_gate_pallas.1} parent=1 // loop_header
      %s13 = sphi 0, %s17
      %p14 = scmp.ge.s32.totalorder %s13, 4
      %s23 = sphi 0, %s25
      %s26 = sphi 0, %s23
      %s27 = sphi 0, %s26
      %s43 = sphi 0, %s27
      %s47 = sphi 0, %s47
      %s49 = sphi 0, %s47
      %s50 = sphi 0, %s49
      %s64 = sphi 0, %s50
      %s68 = sphi 0, %s68
      %s70 = sphi 0, %s68
      %s71 = sphi 0, %s70
      %s85 = sphi 0, %s71
      %s91 = sphi 0, %s93
      %s94 = sphi 0, %s91
      %s95 = sphi 0, %s94
      %s111 = sphi 0, %s95
    $region4: #{spatial_gate_pallas.1} parent=1 // loop_header_branch
      %16 = sbr.rel (%p14) target = $region8
    $region5: #{spatial_gate_pallas.1} parent=1 // loop_body
      %s18 = ssub.s32 %s13, 1
      %s19 = ssub.s32 %s13, 2
      %s20 = sadd.s32 %s13, 1
      %s21 = ssub.s32 %s13, %s20
      %p22 = scmp.eq.s32.totalorder %s21, 0
      %s24 = sadd.s32 %s23, 1
      %s25 = scalar_select %p22, %s23, %s24
      %p28 = pneg %p22
      %p29 = scmp.eq.s32.totalorder %s13, 1
      %p30 = por %p28, %p29
      %p31 = scmp.ne.s32.totalorder %s23, %s26
      %p32 = scmp.eq.s32.totalorder %s13, 0
      %p33 = por %p31, %p32
      %p34 = scmp.ne.s32.totalorder %s23, %s26
      %p35 = scmp.eq.s32.totalorder %s18, 1
      %p36 = por %p34, %p35
      %p37 = scmp.ne.s32.totalorder %s26, %s27
      %p38 = scmp.eq.s32.totalorder %s18, 0
      %p39 = por %p37, %p38
      %p40 = scmp.ne.s32.totalorder %s26, %s27
      %p41 = scmp.eq.s32.totalorder %s19, 1
      %p42 = por %p40, %p41
      %p44 = scmp.ne.s32.totalorder %s27, %s43
      %p45 = scmp.eq.s32.totalorder %s19, 0
      %p46 = por %p44, %p45
      %s48 = sadd.s32 %s47, 1
      %p51 = scmp.eq.s32.totalorder %s13, 1
      %p52 = scmp.ne.s32.totalorder %s47, %s49
      %p53 = scmp.eq.s32.totalorder %s13, 0
      %p54 = por %p52, %p53
      %p55 = scmp.ne.s32.totalorder %s47, %s49
      %p56 = scmp.eq.s32.totalorder %s18, 1
      %p57 = por %p55, %p56
      %p58 = scmp.ne.s32.totalorder %s49, %s50
      %p59 = scmp.eq.s32.totalorder %s18, 0
      %p60 = por %p58, %p59
      %p61 = scmp.ne.s32.totalorder %s49, %s50
      %p62 = scmp.eq.s32.totalorder %s19, 1
      %p63 = por %p61, %p62
      %p65 = scmp.ne.s32.totalorder %s50, %s64
      %p66 = scmp.eq.s32.totalorder %s19, 0
      %p67 = por %p65, %p66
      %s69 = sadd.s32 %s68, 1
      %p72 = scmp.eq.s32.totalorder %s13, 1
      %p73 = scmp.ne.s32.totalorder %s68, %s70
      %p74 = scmp.eq.s32.totalorder %s13, 0
      %p75 = por %p73, %p74
      %p76 = scmp.ne.s32.totalorder %s68, %s70
      %p77 = scmp.eq.s32.totalorder %s18, 1
      %p78 = por %p76, %p77
      %p79 = scmp.ne.s32.totalorder %s70, %s71
      %p80 = scmp.eq.s32.totalorder %s18, 0
      %p81 = por %p79, %p80
      %p82 = scmp.ne.s32.totalorder %s70, %s71
      %p83 = scmp.eq.s32.totalorder %s19, 1
      %p84 = por %p82, %p83
      %p86 = scmp.ne.s32.totalorder %s71, %s85
      %p87 = scmp.eq.s32.totalorder %s19, 0
      %p88 = por %p86, %p87
      %s89 = ssub.s32 %s13, %s20
      %p90 = scmp.eq.s32.totalorder %s89, 0
      %s92 = sadd.s32 %s91, 1
      %s93 = scalar_select %p90, %s91, %s92
      %p96 = pneg %p90
      %p97 = scmp.eq.s32.totalorder %s13, 1
      %p98 = por %p96, %p97
      %p99 = scmp.ne.s32.totalorder %s91, %s94
      %p100 = scmp.eq.s32.totalorder %s13, 0
      %p101 = por %p99, %p100
      %p102 = scmp.ne.s32.totalorder %s91, %s94
      %p103 = scmp.eq.s32.totalorder %s18, 1
      %p104 = por %p102, %p103
      %p105 = scmp.ne.s32.totalorder %s94, %s95
      %p106 = scmp.eq.s32.totalorder %s18, 0
      %p107 = por %p105, %p106
      %p108 = scmp.ne.s32.totalorder %s94, %s95
      %p109 = scmp.eq.s32.totalorder %s19, 1
      %p110 = por %p108, %p109
      %p112 = scmp.ne.s32.totalorder %s95, %s111
      %p113 = scmp.eq.s32.totalorder %s19, 0
      %p114 = por %p112, %p113
      %p115 = scmp.le.s32.totalorder 1, %s13
      %p116 = scmp.lt.s32.totalorder %s13, 3
      %p117 = pnand %p115, %p116
      %p118 = pneg %p117
      // Predicated region
      $region9: #{spatial_gate_pallas.1} parent=5 // pred_check
        _
      $region10: #{spatial_gate_pallas.1} parent=5 // pred_check_branch
        %120 = sbr.rel (%p117) target = $region12
      $region11: #{spatial_gate_pallas.1} parent=5 // pred_region
        %s121 = ssub.s32 %s13, 1
        // Predicated region
        $region13: #{spatial_gate_pallas.1} parent=11 // pred_check
          %p122 = pneg %p60
        $region14: #{spatial_gate_pallas.1} parent=11 // pred_check_branch
          %124 = sbr.rel (%p122) target = $region16
        $region15: #{spatial_gate_pallas.1} parent=11 // pred_region
          _
        $region16: #{spatial_gate_pallas.1} parent=11 // pred_fallthru
          _
        // Predicated region
        $region17: #{spatial_gate_pallas.1} parent=11 // pred_check
          %p125 = pneg %p81
        $region18: #{spatial_gate_pallas.1} parent=11 // pred_check_branch
          %127 = sbr.rel (%p125) target = $region20
        $region19: #{spatial_gate_pallas.1} parent=11 // pred_region
          _
        $region20: #{spatial_gate_pallas.1} parent=11 // pred_fallthru
          _
      $region12: #{spatial_gate_pallas.1} parent=5 // pred_fallthru
        _
      %p128 = scmp.lt.s32.totalorder %s13, 2
      // Predicated region
      $region21: #{spatial_gate_pallas.1} parent=5 // pred_check
        %p129 = pneg %p128
      $region22: #{spatial_gate_pallas.1} parent=5 // pred_check_branch
        %131 = sbr.rel (%p129) target = $region24
      $region23: #{spatial_gate_pallas.1} parent=5 // pred_region
        // Predicated region
        $region25: #{spatial_gate_pallas.1} parent=23 // pred_check
          %p132 = pneg %p33
        $region26: #{spatial_gate_pallas.1} parent=23 // pred_check_branch
          %134 = sbr.rel (%p132) target = $region28
        $region27: #{spatial_gate_pallas.1} parent=23 // pred_region
          %p135 = scmp.lt.s32.totalorder %s13, 1
          %s136 = scalar_select %p135, %s13, 1
          %s137 = smul.addr %s136, 8
          %s138 = smul.addr %s137, 8
          %s139 = scalar_lea.vmem %s0, %s138
        $region28: #{spatial_gate_pallas.1} parent=23 // pred_fallthru
          _
      $region24: #{spatial_gate_pallas.1} parent=5 // pred_fallthru
        _
      %p140 = scmp.le.s32.totalorder 1, %s13
      %p141 = scmp.lt.s32.totalorder %s13, 3
      %p142 = pnand %p140, %p141
      %p143 = pneg %p142
      // Predicated region
      $region29: #{spatial_gate_pallas.1} parent=5 // pred_check
        _
      $region30: #{spatial_gate_pallas.1} parent=5 // pred_check_branch
        %145 = sbr.rel (%p142) target = $region32
      $region31: #{spatial_gate_pallas.1} parent=5 // pred_region
        %s146 = ssub.s32 %s13, 1
        %p147 = scmp.lt.s32.totalorder %s18, 1
        %s148 = scalar_select %p147, %s18, 1
        %s149 = smul.addr %s148, 8
        %s150 = smul.addr %s149, 8
        %s151 = scalar_lea.vmem %s0, %s150
        %p152 = pneg %p39
        %p153 = pneg %p36
        %p154 = pneg %p60
        %p155 = pneg %p57
        %p156 = pneg %p81
        %p157 = pneg %p78
        %p158 = pneg %p107
        %p159 = pneg %p104
        %s160 = sand.u32 %s94, 1
        %s161 = scalar_lea.sflag [#allocation4], %s160
        %s162 = sand.u32 %s94, 1
        %s163 = smul.addr %s162, 64
        %s164 = scalar_lea.vmem [#allocation3], %s163
        %p165 = scmp.lt.s32.totalorder %s18, 1
        %s166 = scalar_select %p165, %s18, 1
        %s167 = smul.addr %s166, 8
        %s168 = smul.addr %s167, 8
        %s169 = scalar_lea.vmem %s0, %s168
        %v171 = vld [vmem:[%s169] sm:$0xff]
        %v172 = vld [vmem:[%s169 + $0x8] sm:$0xff]
        %v173 = vld [vmem:[%s169 + $0x10] sm:$0xff]
        %v174 = vld [vmem:[%s169 + $0x18] sm:$0xff]
        %v175 = vld [vmem:[%s169 + $0x20] sm:$0xff]
        %v176 = vld [vmem:[%s169 + $0x28] sm:$0xff]
        %v177 = vld [vmem:[%s169 + $0x30] sm:$0xff]
        %v178 = vld [vmem:[%s169 + $0x38] sm:$0xff]
        %vm179 = vcmask 130048
        %v180 = vsel %vm179, %v171, -inf
        %v181 = vsel %vm179, %v173, -inf
        %v182 = vsel %vm179, %v175, -inf
        %v183 = vmax.f32 %v180, %v182
        %v184 = vsel %vm179, %v177, -inf
        %v185 = vmax.f32 %v181, %v184
        %v186 = vmax.f32 %v183, %v185
        %v187 = vsel %vm179, %v172, -inf
        %v188 = vsel %vm179, %v174, -inf
        %v189 = vsel %vm179, %v176, -inf
        %v190 = vmax.f32 %v187, %v189
        %v191 = vsel %vm179, %v178, -inf
        %v192 = vmax.f32 %v188, %v191
        %v193 = vmax.f32 %v190, %v192
        %v194 = vsel %vm179, %v171, 0.0
        %v195 = vsel %vm179, %v173, 0.0
        %v196 = vadd.f32 %v194, %v195
        %v197 = vsel %vm179, %v175, 0.0
        %v198 = vadd.f32 %v196, %v197
        %v199 = vsel %vm179, %v177, 0.0
        %v200 = vadd.f32 %v198, %v199
        %v201 = vsel %vm179, %v172, 0.0
        %v202 = vsel %vm179, %v174, 0.0
        %v203 = vadd.f32 %v201, %v202
        %v204 = vsel %vm179, %v176, 0.0
        %v205 = vadd.f32 %v203, %v204
        %v206 = vsel %vm179, %v178, 0.0
        %v207 = vadd.f32 %v205, %v206
        %v208 = vrcp.pop 4.0
        %v209 = vmul.f32 4.0, %v208
        %v210 = vsub.f32 1.0, %v209
        %v211 = vmul.f32 %v208, %v210
        %v212 = vadd.f32 %v208, %v211
        %vm213 = vweird.f32 %v208
        %v214 = vsel %vm213, %v208, %v212
        %v215 = vmul.f32 %v200, %v214
        %v216 = vmul.f32 %v207, %v214
        %219 = vrot.lane.b32.xlu0 %v215, 16
        %v220 = vpop.permute.xlu0 %219
        %221 = vrot.lane.b32.xlu0 %v216, 16
        %v222 = vpop.permute.xlu0 %221
        %v225 = vsel %vm179, %v186, %v220
        %v226 = vsel %vm179, %v193, %v222
        %v227 = vpack.c.bf16 %v226, %v225
        %v228 = vld [vmem:[%s1] sm:$0xf]
        %v229 = vld [vmem:[%s1 + $0x4] sm:$0xf]
        %v230 = vld [vmem:[%s1 + $0x8] sm:$0xf]
        %v231 = vld [vmem:[%s1 + $0xc] sm:$0xf]
        %v236 = vunpack.c.l.b16 %v228
        %v237 = vunpack.c.l.b16 %v229
        %v238 = vunpack.c.l.b16 %v230
        %v239 = vunpack.c.l.b16 %v231
        %v240 = vpack.c.b16 %v237, %v236
        %v241 = vpack.c.b16 %v239, %v238
        %vm244 = vcmask 261120
        %v246 = vsel %vm244, %v227, 0
        %248 = vmatpush.bf16.msra.mxu0 0
        %249 = vmatpush.bf16.msra.mxu0 0
        %250 = vmatpush.bf16.msra.mxu0 0
        %251 = vmatpush.bf16.msra.mxu0 0
        %252 = vmatpush.bf16.msra.mxu0 0
        %253 = vmatpush.bf16.msra.mxu0 0
        %254 = vmatpush.bf16.msra.mxu0 %v241
        %255 = vmatpush.bf16.msra.mxu0 %v240
        %256 = vmatmul.bf16.gmra.mxu0 %v246
        %v257 = vpop.f32.mrf.mxu0
        %v258 = vadd.f32 0.0, %v257
        %v259 = vpop.f32.mrf.mxu0
        %v260 = vadd.f32 0.0, %v259
        %261 = vdwg.mxu0
        %vm264 = vcmask 1042432
        %v265 = vrot.slane %v258, 5
        %v266 = vrot.slane %v260, 5
        %v267 = vsel %vm264, %v265, %v266
        %v270 = vsel %vm264, 0.0, %v265
        %v271 = vadd.f32 %v270, 0.0
        %v272 = vadd.f32 %v267, 0.0
        %s273 = scalar_lea.vmem %s1, 16
        %v274 = vld [vmem:[%s273] sm:$0xf]
        %v275 = vld [vmem:[%s273 + $0x4] sm:$0xf]
        %v276 = vld [vmem:[%s273 + $0x8] sm:$0xf]
        %v277 = vld [vmem:[%s273 + $0xc] sm:$0xf]
        %v282 = vunpack.c.l.b16 %v274
        %v283 = vunpack.c.l.b16 %v275
        %v284 = vunpack.c.l.b16 %v276
        %v285 = vunpack.c.l.b16 %v277
        %v286 = vpack.c.b16 %v283, %v282
        %v287 = vpack.c.b16 %v285, %v284
        %290 = vmatpush.bf16.msra.mxu0 0
        %291 = vmatpush.bf16.msra.mxu0 0
        %292 = vmatpush.bf16.msra.mxu0 0
        %293 = vmatpush.bf16.msra.mxu0 0
        %294 = vmatpush.bf16.msra.mxu0 0
        %295 = vmatpush.bf16.msra.mxu0 0
        %296 = vmatpush.bf16.msra.mxu0 %v287
        %297 = vmatpush.bf16.msra.mxu0 %v286
        %298 = vmatmul.bf16.gmra.mxu0 %v246
        %v299 = vpop.f32.mrf.mxu0
        %v300 = vadd.f32 0.0, %v299
        %v301 = vpop.f32.mrf.mxu0
        %v302 = vadd.f32 0.0, %v301
        %303 = vdwg.mxu0
        %vm306 = vcmask 1041408
        %v307 = vrot.slane %v300, 6
        %v308 = vrot.slane %v302, 6
        %v309 = vsel %vm306, %v307, %v308
        %v312 = vsel %vm306, 0.0, %v307
        %v313 = vadd.f32 %v271, %v312
        %v314 = vadd.f32 %v272, %v309
        %s315 = scalar_lea.vmem %s1, 32
        %v316 = vld [vmem:[%s315] sm:$0xf]
        %v317 = vld [vmem:[%s315 + $0x4] sm:$0xf]
        %v318 = vld [vmem:[%s315 + $0x8] sm:$0xf]
        %v319 = vld [vmem:[%s315 + $0xc] sm:$0xf]
        %v324 = vunpack.c.l.b16 %v316
        %v325 = vunpack.c.l.b16 %v317
        %v326 = vunpack.c.l.b16 %v318
        %v327 = vunpack.c.l.b16 %v319
        %v328 = vpack.c.b16 %v325, %v324
        %v329 = vpack.c.b16 %v327, %v326
        %332 = vmatpush.bf16.msra.mxu0 0
        %333 = vmatpush.bf16.msra.mxu0 0
        %334 = vmatpush.bf16.msra.mxu0 0
        %335 = vmatpush.bf16.msra.mxu0 0
        %336 = vmatpush.bf16.msra.mxu0 0
        %337 = vmatpush.bf16.msra.mxu0 0
        %338 = vmatpush.bf16.msra.mxu0 %v329
        %339 = vmatpush.bf16.msra.mxu0 %v328
        %340 = vmatmul.bf16.gmra.mxu0 %v246
        %v341 = vpop.f32.mrf.mxu0
        %v342 = vadd.f32 0.0, %v341
        %v343 = vpop.f32.mrf.mxu0
        %v344 = vadd.f32 0.0, %v343
        %345 = vdwg.mxu0
        %vm348 = vcmask 1040384
        %v349 = vrot.slane %v342, 7
        %v350 = vrot.slane %v344, 7
        %v351 = vsel %vm348, %v349, %v350
        %v354 = vsel %vm348, 0.0, %v349
        %v355 = vadd.f32 %v313, %v354
        %v356 = vadd.f32 %v314, %v351
        %s357 = scalar_lea.vmem %s1, 48
        %v358 = vld [vmem:[%s357] sm:$0xf]
        %v359 = vld [vmem:[%s357 + $0x4] sm:$0xf]
        %v360 = vld [vmem:[%s357 + $0x8] sm:$0xf]
        %v361 = vld [vmem:[%s357 + $0xc] sm:$0xf]
        %v366 = vunpack.c.l.b16 %v358
        %v367 = vunpack.c.l.b16 %v359
        %v368 = vunpack.c.l.b16 %v360
        %v369 = vunpack.c.l.b16 %v361
        %v370 = vpack.c.b16 %v367, %v366
        %v371 = vpack.c.b16 %v369, %v368
        %374 = vmatpush.bf16.msra.mxu0 0
        %375 = vmatpush.bf16.msra.mxu0 0
        %376 = vmatpush.bf16.msra.mxu0 0
        %377 = vmatpush.bf16.msra.mxu0 0
        %378 = vmatpush.bf16.msra.mxu0 0
        %379 = vmatpush.bf16.msra.mxu0 0
        %380 = vmatpush.bf16.msra.mxu0 %v371
        %381 = vmatpush.bf16.msra.mxu0 %v370
        %382 = vmatmul.bf16.gmra.mxu0 %v246
        %v383 = vpop.f32.mrf.mxu0
        %v384 = vadd.f32 0.0, %v383
        %v385 = vpop.f32.mrf.mxu0
        %v386 = vadd.f32 0.0, %v385
        %387 = vdwg.mxu0
        %v388 = vadd.f32 %v355, %v384
        %v389 = vadd.f32 %v356, %v386
        %s390 = scalar_lea.vmem %s1, 64
        %v391 = vld [vmem:[%s390] sm:$0xf]
        %v392 = vld [vmem:[%s390 + $0x4] sm:$0xf]
        %v393 = vld [vmem:[%s390 + $0x8] sm:$0xf]
        %v394 = vld [vmem:[%s390 + $0xc] sm:$0xf]
        %v399 = vunpack.c.l.b16 %v391
        %v400 = vunpack.c.l.b16 %v392
        %v401 = vunpack.c.l.b16 %v393
        %v402 = vunpack.c.l.b16 %v394
        %v403 = vpack.c.b16 %v400, %v399
        %v404 = vpack.c.b16 %v402, %v401
        %407 = vmatpush.bf16.msra.mxu0 0
        %408 = vmatpush.bf16.msra.mxu0 0
        %409 = vmatpush.bf16.msra.mxu0 0
        %410 = vmatpush.bf16.msra.mxu0 0
        %411 = vmatpush.bf16.msra.mxu0 0
        %412 = vmatpush.bf16.msra.mxu0 0
        %413 = vmatpush.bf16.msra.mxu0 %v404
        %414 = vmatpush.bf16.msra.mxu0 %v403
        %415 = vmatmul.bf16.gmra.mxu0 %v246
        %v416 = vpop.f32.mrf.mxu0
        %v417 = vadd.f32 0.0, %v416
        %v418 = vpop.f32.mrf.mxu0
        %v419 = vadd.f32 0.0, %v418
        %420 = vdwg.mxu0
        %vm423 = vcmask 1046528
        %v424 = vrot.slane %v417, 1
        %v425 = vrot.slane %v419, 1
        %v426 = vsel %vm423, %v424, %v425
        %v429 = vsel %vm423, %v425, 0.0
        %v430 = vadd.f32 %v388, %v426
        %v431 = vadd.f32 %v389, %v429
        %s432 = scalar_lea.vmem %s1, 80
        %v433 = vld [vmem:[%s432] sm:$0xf]
        %v434 = vld [vmem:[%s432 + $0x4] sm:$0xf]
        %v435 = vld [vmem:[%s432 + $0x8] sm:$0xf]
        %v436 = vld [vmem:[%s432 + $0xc] sm:$0xf]
        %v441 = vunpack.c.l.b16 %v433
        %v442 = vunpack.c.l.b16 %v434
        %v443 = vunpack.c.l.b16 %v435
        %v444 = vunpack.c.l.b16 %v436
        %v445 = vpack.c.b16 %v442, %v441
        %v446 = vpack.c.b16 %v444, %v443
        %449 = vmatpush.bf16.msra.mxu0 0
        %450 = vmatpush.bf16.msra.mxu0 0
        %451 = vmatpush.bf16.msra.mxu0 0
        %452 = vmatpush.bf16.msra.mxu0 0
        %453 = vmatpush.bf16.msra.mxu0 0
        %454 = vmatpush.bf16.msra.mxu0 0
        %455 = vmatpush.bf16.msra.mxu0 %v446
        %456 = vmatpush.bf16.msra.mxu0 %v445
        %457 = vmatmul.bf16.gmra.mxu0 %v246
        %v458 = vpop.f32.mrf.mxu0
        %v459 = vadd.f32 0.0, %v458
        %v460 = vpop.f32.mrf.mxu0
        %v461 = vadd.f32 0.0, %v460
        %462 = vdwg.mxu0
        %vm465 = vcmask 1045504
        %v466 = vrot.slane %v459, 2
        %v467 = vrot.slane %v461, 2
        %v468 = vsel %vm465, %v466, %v467
        %v471 = vsel %vm465, %v467, 0.0
        %v472 = vadd.f32 %v430, %v468
        %v473 = vadd.f32 %v431, %v471
        %s474 = scalar_lea.vmem %s1, 96
        %v475 = vld [vmem:[%s474] sm:$0xf]
        %v476 = vld [vmem:[%s474 + $0x4] sm:$0xf]
        %v477 = vld [vmem:[%s474 + $0x8] sm:$0xf]
        %v478 = vld [vmem:[%s474 + $0xc] sm:$0xf]
        %v483 = vunpack.c.l.b16 %v475
        %v484 = vunpack.c.l.b16 %v476
        %v485 = vunpack.c.l.b16 %v477
        %v486 = vunpack.c.l.b16 %v478
        %v487 = vpack.c.b16 %v484, %v483
        %v488 = vpack.c.b16 %v486, %v485
        %491 = vmatpush.bf16.msra.mxu0 0
        %492 = vmatpush.bf16.msra.mxu0 0
        %493 = vmatpush.bf16.msra.mxu0 0
        %494 = vmatpush.bf16.msra.mxu0 0
        %495 = vmatpush.bf16.msra.mxu0 0
        %496 = vmatpush.bf16.msra.mxu0 0
        %497 = vmatpush.bf16.msra.mxu0 %v488
        %498 = vmatpush.bf16.msra.mxu0 %v487
        %499 = vmatmul.bf16.gmra.mxu0 %v246
        %v500 = vpop.f32.mrf.mxu0
        %v501 = vadd.f32 0.0, %v500
        %v502 = vpop.f32.mrf.mxu0
        %v503 = vadd.f32 0.0, %v502
        %504 = vdwg.mxu0
        %vm507 = vcmask 1044480
        %v508 = vrot.slane %v501, 3
        %v509 = vrot.slane %v503, 3
        %v510 = vsel %vm507, %v508, %v509
        %v513 = vsel %vm507, %v509, 0.0
        %v514 = vadd.f32 %v472, %v510
        %v515 = vadd.f32 %v473, %v513
        %s516 = sld [smem:[#allocation2]]
        %v517 = vstv %s516
        %v518 = vadd.f32 %v514, %v517
        %v519 = vadd.f32 %v515, %v517
        %v520 = vxor.u32 %v518, 2147483648
        %v521 = vxor.u32 %v519, 2147483648
        %v522 = vmul.f32 %v520, 1.442695
        %v523 = vpow.pop %v522
        %v524 = vmul.f32 %v521, 1.442695
        %v525 = vpow.pop %v524
        %v526 = vadd.f32 %v523, 1.0
        %v527 = vadd.f32 %v525, 1.0
        %v528 = vrcp.pop %v526
        %v529 = vmul.f32 %v526, %v528
        %v530 = vsub.f32 1.0, %v529
        %v531 = vmul.f32 %v528, %v530
        %v532 = vadd.f32 %v528, %v531
        %vm533 = vweird.f32 %v526
        %vm534 = vweird.f32 %v528
        %vm535 = vmor %vm533, %vm534
        %v536 = vsel %vm535, %v528, %v532
        %v537 = vand.u32 2147483647, %v526
        %vm538 = vcmp.eq.f32.partialorder %v537, 8.507059e+37
        %v539 = vand.u32 %v526, 2147483648
        %v540 = vor.u32 1.1754944e-38, %v539
        %v541 = vsel %vm538, %v540, %v536
        %v542 = vmul.f32 1.0, %v541
        %v543 = vrcp.pop %v527
        %v544 = vmul.f32 %v527, %v543
        %v545 = vsub.f32 1.0, %v544
        %v546 = vmul.f32 %v543, %v545
        %v547 = vadd.f32 %v543, %v546
        %vm548 = vweird.f32 %v527
        %vm549 = vweird.f32 %v543
        %vm550 = vmor %vm548, %vm549
        %v551 = vsel %vm550, %v543, %v547
        %v552 = vand.u32 2147483647, %v527
        %vm553 = vcmp.eq.f32.partialorder %v552, 8.507059e+37
        %v554 = vand.u32 %v527, 2147483648
        %v555 = vor.u32 1.1754944e-38, %v554
        %v556 = vsel %vm553, %v555, %v551
        %v557 = vmul.f32 1.0, %v556
        %v558 = vmul.f32 %v171, %v542
        %v559 = vmul.f32 %v172, %v557
        %v560 = vmul.f32 %v173, %v542
        %v561 = vmul.f32 %v174, %v557
        %v562 = vmul.f32 %v175, %v542
        %v563 = vmul.f32 %v176, %v557
        %v564 = vmul.f32 %v177, %v542
        %v565 = vmul.f32 %v178, %v557
        %566 = vst.msk [vmem:[%s164] sm:$0xff] %vm179, %v558
        %567 = vst.msk [vmem:[%s164 + $0x8] sm:$0xff] %vm179, %v559
        %568 = vst.msk [vmem:[%s164 + $0x10] sm:$0xff] %vm179, %v560
        %569 = vst.msk [vmem:[%s164 + $0x18] sm:$0xff] %vm179, %v561
        %570 = vst.msk [vmem:[%s164 + $0x20] sm:$0xff] %vm179, %v562
        %571 = vst.msk [vmem:[%s164 + $0x28] sm:$0xff] %vm179, %v563
        %572 = vst.msk [vmem:[%s164 + $0x30] sm:$0xff] %vm179, %v564
        %573 = vst.msk [vmem:[%s164 + $0x38] sm:$0xff] %vm179, %v565
        %s574 = sand.u32 %s94, 1
        %s575 = scalar_lea.sflag [#allocation4], %s574
        %s576 = sand.u32 %s94, 1
        %s577 = smul.addr %s576, 64
        %s578 = scalar_lea.vmem [#allocation3], %s577
        // Predicated region
        $region33: #{spatial_gate_pallas.1} parent=31 // pred_check
          %p579 = pneg %p104
        $region34: #{spatial_gate_pallas.1} parent=31 // pred_check_branch
          %581 = sbr.rel (%p579) target = $region36
        $region35: #{spatial_gate_pallas.1} parent=31 // pred_region
          %583 = vsyncadd %s575, 0
          %s584 = smul.addr %s18, 8
          %s585 = smul.addr %s584, 8
          %s586 = scalar_lea.hbm %s3, %s585
          %s587 = sshll.u32 %s578, 4
          %s588 = int_to_ptr.vmem [resolvable:$true] %s587
          %s589 = sshll.u32 %s586, 4
          %s590 = int_to_ptr.hbm [resolvable:$true] %s589
          %595 = dma.vmem_to_hbm [thread:$0]  %s588, 1024, %s590, %s575, 128, 128, 8
        $region36: #{spatial_gate_pallas.1} parent=31 // pred_fallthru
          _
      $region32: #{spatial_gate_pallas.1} parent=5 // pred_fallthru
        _
      %p596 = scmp.le.s32.totalorder 2, %s13
      // Predicated region
      $region37: #{spatial_gate_pallas.1} parent=5 // pred_check
        %p597 = pneg %p596
      $region38: #{spatial_gate_pallas.1} parent=5 // pred_check_branch
        %599 = sbr.rel (%p597) target = $region40
      $region39: #{spatial_gate_pallas.1} parent=5 // pred_region
        %s600 = ssub.s32 %s13, 2
        // Predicated region
        $region41: #{spatial_gate_pallas.1} parent=39 // pred_check
          %p601 = pneg %p110
        $region42: #{spatial_gate_pallas.1} parent=39 // pred_check_branch
          %603 = sbr.rel (%p601) target = $region44
        $region43: #{spatial_gate_pallas.1} parent=39 // pred_region
          %s604 = sand.u32 %s95, 1
          %s605 = scalar_lea.sflag [#allocation4], %s604
          %s606 = sand.u32 %s95, 1
          %s607 = smul.addr %s606, 64
          %s608 = scalar_lea.vmem [#allocation3], %s607
          %610 = dma.done %s605, 1024
        $region44: #{spatial_gate_pallas.1} parent=39 // pred_fallthru
          _
      $region40: #{spatial_gate_pallas.1} parent=5 // pred_fallthru
        _
    $region6: #{spatial_gate_pallas.1} parent=1 // loop_footer
      %s17 = sadd.s32 1, %s13
    $region7: #{spatial_gate_pallas.1} parent=1 // loop_footer_branch
      %12 = sbr.rel target = $region3
    $region8: #{spatial_gate_pallas.1} parent=1 // loop_exit
      _
    %611 = vsyncpa [#allocation4], 1
    %s612 = scalar_lea.sflag [#allocation4], 1
    %613 = vsyncpa %s612, 1

</llo_original>
